<compile_context>
chip_gen: v7x
topology: tpu7x:2x2x1
jax: 0.10.0
libtpu: 0.0.40
codegen_flags: <defaults>
</compile_context>

<pallas_src>
import functools

import jax
import jax.numpy as jnp
from jax.experimental import pallas as pl
from jax.experimental.pallas import tpu as pltpu


_BLOCK_BYTES_BUDGET = 4 * 1024 * 1024    # target input bytes per grid step
_VMEM_LIMIT_BYTES = 32 * 1024 * 1024     # explicit scoped-VMEM limit (all gens)


# ----------------------------- Pallas kernel --------------------------------

def _make_loss_kernel(ns, na):
    """Fused total-reduction kernel.

    Ref layout (inputs, then outputs):
      z_ref                          : (bb, Mz, Lz)   batch-block of z
      s_refs[0..ns)                  : (bb, Ms, Ls)   batch-blocks of each log_s
      a_refs[0..na)                  : (bb, Ma, La)   batch-blocks of each attn map
      t_ref          (only if na>0)  : (bb, Ma, La)   batch-block of shared target
      out_zz, out_s, out_sse         : (1, 1) f32 resident running totals
    """

    def kernel(*refs):
        idx = 0
        z_ref = refs[idx]; idx += 1
        s_refs = refs[idx:idx + ns]; idx += ns
        a_refs = refs[idx:idx + na]; idx += na
        t_ref = None
        if na:
            t_ref = refs[idx]; idx += 1
        out_zz, out_s, out_sse = refs[idx], refs[idx + 1], refs[idx + 2]

        i = pl.program_id(0)

        @pl.when(i == 0)
        def _init():
            out_zz[...] = jnp.zeros_like(out_zz)
            out_s[...] = jnp.zeros_like(out_s)
            out_sse[...] = jnp.zeros_like(out_sse)

        # ---- sum(z*z) ------------------------------------------------------
        z = z_ref[...].astype(jnp.float32)
        out_zz[...] += jnp.sum(z * z).reshape(1, 1)

        # ---- sum over all log_s tensors -------------------------------------
        if ns:
            s_total = jnp.zeros((1, 1), jnp.float32)
            for r in s_refs:
                s_total += jnp.sum(r[...].astype(jnp.float32)).reshape(1, 1)
            out_s[...] += s_total

        # ---- SSE over all attention maps vs. the shared target --------------
        if na:
            t = t_ref[...].astype(jnp.float32)   # target block read once / step
            sse = jnp.zeros((1, 1), jnp.float32)
            for r in a_refs:
                d = r[...].astype(jnp.float32) - t
                sse += jnp.sum(d * d).reshape(1, 1)
            out_sse[...] += sse

    return kernel


def _padded_block_bytes(mid, last, itemsize):
    """VMEM footprint of one (mid, last) slice incl. (sublane, 128) padding."""
    sub = {4: 8, 2: 16, 1: 32}.get(itemsize, 8)
    mid_p = -(-mid // sub) * sub
    last_p = -(-last // 128) * 128
    return mid_p * last_p * itemsize


def _fused_loss_sums(z3, s3_list, a3_list, t3):
    """One pallas_call computing (sum(z*z), sum(all log_s), SSE(all attn))."""
    B = z3.shape[0]
    ns, na = len(s3_list), len(a3_list)
    operands = [z3] + list(s3_list) + list(a3_list) + ([t3] if na else [])

    per_elem_bytes = sum(
        _padded_block_bytes(int(op.shape[1]), int(op.shape[2]), op.dtype.itemsize)
        for op in operands)
    # Largest divisor of B whose per-step block set fits the budget.
    bb = 1
    for d in range(1, B + 1):
        if B % d == 0 and d * per_elem_bytes <= _BLOCK_BYTES_BUDGET:
            bb = d
    nb = B // bb
    # TODO(synk): if a single batch element exceeds the budget, sub-block the
    # trailing dims as well instead of relying on the 32 MiB VMEM limit.

    in_specs = [
        pl.BlockSpec((bb,) + tuple(op.shape[1:]), lambda i: (i, 0, 0))
        for op in operands
    ]
    out_specs = tuple(pl.BlockSpec((1, 1), lambda i: (0, 0)) for _ in range(3))
    out_shape = tuple(jax.ShapeDtypeStruct((1, 1), jnp.float32) for _ in range(3))

    zz, s_sum, sse = pl.pallas_call(
        _make_loss_kernel(ns, na),
        out_shape=out_shape,
        grid_spec=pltpu.PrefetchScalarGridSpec(
            num_scalar_prefetch=0,
            grid=(nb,),
            in_specs=in_specs,
            out_specs=out_specs,
        ),
        compiler_params=pltpu.CompilerParams(
            dimension_semantics=("arbitrary",),
            vmem_limit_bytes=_VMEM_LIMIT_BYTES),
    )(*operands)
    return zz[0, 0], s_sum[0, 0], sse[0, 0]


# ------------------------------- Wrappers ------------------------------------

def _b3d(x):
    """(B, ...) -> (B, mid, last) with a free contiguous reshape (no copy)."""
    x = jnp.asarray(x)
    if x.ndim == 2:
        return x[:, None, :]
    if x.ndim == 3:
        return x
    return x.reshape(x.shape[0], -1, x.shape[-1])


def _host_print(z_term, s_term, w_term, attn_loss):
    print('{:.5f}, {:.5f}, {:.5f}, {:.7f}'.format(
        float(z_term), float(s_term), float(w_term), float(attn_loss)))


@jax.jit
def _waveglow_loss_jit(z, log_s_list, log_det_W_list, dec_enc_attn,
                       attn_target, sigma):
    n = z.shape[0] * z.shape[1] * z.shape[2]

    z3 = _b3d(z)
    s3 = [_b3d(s) for s in log_s_list]
    a3 = [_b3d(a) for a in dec_enc_attn]
    t3 = _b3d(attn_target) if len(dec_enc_attn) else None

    zz_sum, log_s_total, attn_sse = _fused_loss_sums(z3, s3, a3, t3)

    # log|det W| terms are per-flow scalars -- plain jnp adds, no kernel needed.
    log_det_W_total = jnp.zeros((), jnp.float32)
    for w in log_det_W_list:
        log_det_W_total = log_det_W_total + jnp.asarray(w, jnp.float32).reshape(())

    if len(dec_enc_attn):
        n_attn = 1
        for d in attn_target.shape:
            n_attn *= d
        attn_loss = attn_sse / jnp.float32(n_attn)   # sum of per-map MSELoss
    else:
        attn_loss = jnp.zeros((), jnp.float32)

    half_inv_sigma2 = 1.0 / (2.0 * sigma * sigma)
    loss = zz_sum * half_inv_sigma2 - log_s_total - log_det_W_total
    inv_n = 1.0 / n

    # Asynchronous host print (reference module's print side-effect) -- does
    # not block dispatch with a device->host sync.
    jax.debug.callback(_host_print,
                       zz_sum * half_inv_sigma2 * inv_n,
                       log_s_total * inv_n,
                       log_det_W_total * inv_n,
                       attn_loss)
    # NOTE: as in the PyTorch reference, attn_loss is NOT part of the returned loss.
    return loss * inv_n


def waveglow_loss(model_output, attn_target, sigma=1.0):
    """Mirrors WaveGlowLoss.forward."""
    z, log_s_list, log_det_W_list, dec_enc_attn = model_output
    return _waveglow_loss_jit(z, tuple(log_s_list), tuple(log_det_W_list),
                              tuple(dec_enc_attn), attn_target, float(sigma))


# ---------------------------------- Main -------------------------------------

if __name__ == "__main__":
    key = jax.random.PRNGKey(0)
    k_z, k_s0, k_s1, k_a0, k_a1, k_tgt, k_w = jax.random.split(key, 7)

    # Small shapes consistent with WaveGlow-style outputs.
    B, n_group, T = 2, 8, 64                      # z: (batch, n_group, time)
    z = jax.random.normal(k_z, (B, n_group, T), jnp.float32)

    # Two flow steps: log_s has half the channels of z.
    log_s_list = [
        jax.random.normal(k_s0, (B, n_group // 2, T), jnp.float32) * 0.1,
        jax.random.normal(k_s1, (B, n_group // 2, T), jnp.float32) * 0.1,
    ]
    # Per-flow log|det W| scalars from the invertible 1x1 convs.
    wvals = jax.random.normal(k_w, (2,), jnp.float32) * 0.05
    log_det_W_list = [wvals[0], wvals[1]]

    # Decoder-encoder attention maps (batch, T_dec, T_enc) and shared target.
    attn_shape = (B, 16, 8)
    dec_enc_attn = [
        jax.nn.softmax(jax.random.normal(k_a0, attn_shape, jnp.float32), -1),
        jax.nn.softmax(jax.random.normal(k_a1, attn_shape, jnp.float32), -1),
    ]
    attn_target = jax.nn.softmax(
        jax.random.normal(k_tgt, attn_shape, jnp.float32), -1)

    model_output = (z, log_s_list, log_det_W_list, dec_enc_attn)

    loss = waveglow_loss(model_output, attn_target, sigma=1.0)
    jax.block_until_ready(loss)

    # Pure-jnp reference check (same forward semantics).
    nz = B * n_group * T
    ref_log_s_total = sum(jnp.sum(s) for s in log_s_list)
    ref_log_det_W_total = sum(log_det_W_list)
    ref_loss = (jnp.sum(z * z) / 2.0
                - ref_log_s_total - ref_log_det_W_total) / nz
    assert jnp.allclose(loss, ref_loss, rtol=1e-4, atol=1e-5), (
        float(loss), float(ref_loss))

    if hasattr(jax, "effects_barrier"):
        jax.effects_barrier()   # flush the async debug print before exiting
    print("KERNEL_OK")
</pallas_src>

<mosaic_0001>
module attributes {stable_mosaic.version = 11 : i64} {
  func.func @kernel(%arg0: i32, %arg1: memref<2x8x64xf32, #tpu.memory_space<vmem>>, %arg2: memref<2x4x64xf32, #tpu.memory_space<vmem>>, %arg3: memref<2x4x64xf32, #tpu.memory_space<vmem>>, %arg4: memref<2x16x8xf32, #tpu.memory_space<vmem>>, %arg5: memref<2x16x8xf32, #tpu.memory_space<vmem>>, %arg6: memref<2x16x8xf32, #tpu.memory_space<vmem>>, %arg7: memref<1x1xf32, #tpu.memory_space<vmem>>, %arg8: memref<1x1xf32, #tpu.memory_space<vmem>>, %arg9: memref<1x1xf32, #tpu.memory_space<vmem>>) attributes {dimension_semantics = [#tpu.dimension_semantics<arbitrary>], iteration_bounds = array<i64: 1>, scalar_prefetch = 0 : i64, scratch_operands = 0 : i64, tpu.core_type = #tpu.core_type<tc>, window_params = [{transform_indices = @transform_0, window_bounds = array<i64: 2, 8, 64>}, {transform_indices = @transform_1, window_bounds = array<i64: 2, 4, 64>}, {transform_indices = @transform_2, window_bounds = array<i64: 2, 4, 64>}, {transform_indices = @transform_3, window_bounds = array<i64: 2, 16, 8>}, {transform_indices = @transform_4, window_bounds = array<i64: 2, 16, 8>}, {transform_indices = @transform_5, window_bounds = array<i64: 2, 16, 8>}, {pipeline_mode = #tpu.pipeline_mode<synchronous>, transform_indices = @transform_6, window_bounds = array<i64: 1, 1>}, {pipeline_mode = #tpu.pipeline_mode<synchronous>, transform_indices = @transform_7, window_bounds = array<i64: 1, 1>}, {pipeline_mode = #tpu.pipeline_mode<synchronous>, transform_indices = @transform_8, window_bounds = array<i64: 1, 1>}]} {
    %c0_i32 = arith.constant 0 : i32
    %0 = arith.cmpi eq, %arg0, %c0_i32 : i32
    %1 = arith.extui %0 : i1 to i32
    %c0_i32_0 = arith.constant 0 : i32
    %2 = arith.cmpi ne, %1, %c0_i32_0 : i32
    scf.if %2 {
      %cst_36 = arith.constant 0.000000e+00 : f32
      %54 = vector.broadcast %cst_36 : f32 to vector<1x1xf32>
      %c0_37 = arith.constant 0 : index
      %c0_38 = arith.constant 0 : index
      %55 = vector.load %arg7[%c0_37, %c0_38] : memref<1x1xf32, #tpu.memory_space<vmem>>, vector<1x1xf32>
      tpu.vector_store %arg7[%c0_37, %c0_38], %54 {strides = array<i32>} : memref<1x1xf32, #tpu.memory_space<vmem>>, vector<1x1xf32>,
      %cst_39 = arith.constant 0.000000e+00 : f32
      %56 = vector.broadcast %cst_39 : f32 to vector<1x1xf32>
      %c0_40 = arith.constant 0 : index
      %c0_41 = arith.constant 0 : index
      %57 = vector.load %arg8[%c0_40, %c0_41] : memref<1x1xf32, #tpu.memory_space<vmem>>, vector<1x1xf32>
      tpu.vector_store %arg8[%c0_40, %c0_41], %56 {strides = array<i32>} : memref<1x1xf32, #tpu.memory_space<vmem>>, vector<1x1xf32>,
      %cst_42 = arith.constant 0.000000e+00 : f32
      %58 = vector.broadcast %cst_42 : f32 to vector<1x1xf32>
      %c0_43 = arith.constant 0 : index
      %c0_44 = arith.constant 0 : index
      %59 = vector.load %arg9[%c0_43, %c0_44] : memref<1x1xf32, #tpu.memory_space<vmem>>, vector<1x1xf32>
      tpu.vector_store %arg9[%c0_43, %c0_44], %58 {strides = array<i32>} : memref<1x1xf32, #tpu.memory_space<vmem>>, vector<1x1xf32>,
    } else {
    }
    %c0 = arith.constant 0 : index
    %c0_1 = arith.constant 0 : index
    %c0_2 = arith.constant 0 : index
    %3 = vector.load %arg1[%c0, %c0_1, %c0_2] : memref<2x8x64xf32, #tpu.memory_space<vmem>>, vector<2x8x64xf32>
    %c0_3 = arith.constant 0 : index
    %c0_4 = arith.constant 0 : index
    %4 = vector.load %arg7[%c0_3, %c0_4] : memref<1x1xf32, #tpu.memory_space<vmem>>, vector<1x1xf32>
    %5 = arith.mulf %3, %3 : vector<2x8x64xf32>
    %6 = vector.shape_cast %5 : vector<2x8x64xf32> to vector<1x2x8x64xf32>
    %cst = arith.constant dense<0.000000e+00> : vector<1xf32>
    %7 = vector.multi_reduction <add>, %6, %cst [1, 2, 3] : vector<1x2x8x64xf32> to vector<1xf32>
    %8 = vector.shape_cast %7 : vector<1xf32> to vector<1x1x1x1xf32>
    %9 = vector.extract %8[0, 0, 0, 0] : f32 from vector<1x1x1x1xf32>
    %10 = vector.broadcast %9 : f32 to vector<1x1xf32>
    %11 = arith.addf %4, %10 : vector<1x1xf32>
    %c0_5 = arith.constant 0 : index
    %c0_6 = arith.constant 0 : index
    %12 = vector.load %arg7[%c0_5, %c0_6] : memref<1x1xf32, #tpu.memory_space<vmem>>, vector<1x1xf32>
    tpu.vector_store %arg7[%c0_5, %c0_6], %11 {strides = array<i32>} : memref<1x1xf32, #tpu.memory_space<vmem>>, vector<1x1xf32>,
    %cst_7 = arith.constant 0.000000e+00 : f32
    %13 = vector.broadcast %cst_7 : f32 to vector<1x1xf32>
    %c0_8 = arith.constant 0 : index
    %c0_9 = arith.constant 0 : index
    %c0_10 = arith.constant 0 : index
    %14 = vector.load %arg2[%c0_8, %c0_9, %c0_10] : memref<2x4x64xf32, #tpu.memory_space<vmem>>, vector<2x4x64xf32>
    %15 = vector.shape_cast %14 : vector<2x4x64xf32> to vector<1x2x4x64xf32>
    %cst_11 = arith.constant dense<0.000000e+00> : vector<1xf32>
    %16 = vector.multi_reduction <add>, %15, %cst_11 [1, 2, 3] : vector<1x2x4x64xf32> to vector<1xf32>
    %17 = vector.shape_cast %16 : vector<1xf32> to vector<1x1x1x1xf32>
    %18 = vector.extract %17[0, 0, 0, 0] : f32 from vector<1x1x1x1xf32>
    %19 = vector.broadcast %18 : f32 to vector<1x1xf32>
    %20 = arith.addf %13, %19 : vector<1x1xf32>
    %c0_12 = arith.constant 0 : index
    %c0_13 = arith.constant 0 : index
    %c0_14 = arith.constant 0 : index
    %21 = vector.load %arg3[%c0_12, %c0_13, %c0_14] : memref<2x4x64xf32, #tpu.memory_space<vmem>>, vector<2x4x64xf32>
    %22 = vector.shape_cast %21 : vector<2x4x64xf32> to vector<1x2x4x64xf32>
    %cst_15 = arith.constant dense<0.000000e+00> : vector<1xf32>
    %23 = vector.multi_reduction <add>, %22, %cst_15 [1, 2, 3] : vector<1x2x4x64xf32> to vector<1xf32>
    %24 = vector.shape_cast %23 : vector<1xf32> to vector<1x1x1x1xf32>
    %25 = vector.extract %24[0, 0, 0, 0] : f32 from vector<1x1x1x1xf32>
    %26 = vector.broadcast %25 : f32 to vector<1x1xf32>
    %27 = arith.addf %20, %26 : vector<1x1xf32>
    %c0_16 = arith.constant 0 : index
    %c0_17 = arith.constant 0 : index
    %28 = vector.load %arg8[%c0_16, %c0_17] : memref<1x1xf32, #tpu.memory_space<vmem>>, vector<1x1xf32>
    %29 = arith.addf %28, %27 : vector<1x1xf32>
    %c0_18 = arith.constant 0 : index
    %c0_19 = arith.constant 0 : index
    %30 = vector.load %arg8[%c0_18, %c0_19] : memref<1x1xf32, #tpu.memory_space<vmem>>, vector<1x1xf32>
    tpu.vector_store %arg8[%c0_18, %c0_19], %29 {strides = array<i32>} : memref<1x1xf32, #tpu.memory_space<vmem>>, vector<1x1xf32>,
    %c0_20 = arith.constant 0 : index
    %c0_21 = arith.constant 0 : index
    %c0_22 = arith.constant 0 : index
    %31 = vector.load %arg6[%c0_20, %c0_21, %c0_22] : memref<2x16x8xf32, #tpu.memory_space<vmem>>, vector<2x16x8xf32>
    %cst_23 = arith.constant 0.000000e+00 : f32
    %32 = vector.broadcast %cst_23 : f32 to vector<1x1xf32>
    %c0_24 = arith.constant 0 : index
    %c0_25 = arith.constant 0 : index
    %c0_26 = arith.constant 0 : index
    %33 = vector.load %arg4[%c0_24, %c0_25, %c0_26] : memref<2x16x8xf32, #tpu.memory_space<vmem>>, vector<2x16x8xf32>
    %34 = arith.subf %33, %31 : vector<2x16x8xf32>
    %35 = arith.mulf %34, %34 : vector<2x16x8xf32>
    %36 = vector.shape_cast %35 : vector<2x16x8xf32> to vector<1x2x16x8xf32>
    %cst_27 = arith.constant dense<0.000000e+00> : vector<1xf32>
    %37 = vector.multi_reduction <add>, %36, %cst_27 [1, 2, 3] : vector<1x2x16x8xf32> to vector<1xf32>
    %38 = vector.shape_cast %37 : vector<1xf32> to vector<1x1x1x1xf32>
    %39 = vector.extract %38[0, 0, 0, 0] : f32 from vector<1x1x1x1xf32>
    %40 = vector.broadcast %39 : f32 to vector<1x1xf32>
    %41 = arith.addf %32, %40 : vector<1x1xf32>
    %c0_28 = arith.constant 0 : index
    %c0_29 = arith.constant 0 : index
    %c0_30 = arith.constant 0 : index
    %42 = vector.load %arg5[%c0_28, %c0_29, %c0_30] : memref<2x16x8xf32, #tpu.memory_space<vmem>>, vector<2x16x8xf32>
    %43 = arith.subf %42, %31 : vector<2x16x8xf32>
    %44 = arith.mulf %43, %43 : vector<2x16x8xf32>
    %45 = vector.shape_cast %44 : vector<2x16x8xf32> to vector<1x2x16x8xf32>
    %cst_31 = arith.constant dense<0.000000e+00> : vector<1xf32>
    %46 = vector.multi_reduction <add>, %45, %cst_31 [1, 2, 3] : vector<1x2x16x8xf32> to vector<1xf32>
    %47 = vector.shape_cast %46 : vector<1xf32> to vector<1x1x1x1xf32>
    %48 = vector.extract %47[0, 0, 0, 0] : f32 from vector<1x1x1x1xf32>
    %49 = vector.broadcast %48 : f32 to vector<1x1xf32>
    %50 = arith.addf %41, %49 : vector<1x1xf32>
    %c0_32 = arith.constant 0 : index
    %c0_33 = arith.constant 0 : index
    %51 = vector.load %arg9[%c0_32, %c0_33] : memref<1x1xf32, #tpu.memory_space<vmem>>, vector<1x1xf32>
    %52 = arith.addf %51, %50 : vector<1x1xf32>
    %c0_34 = arith.constant 0 : index
    %c0_35 = arith.constant 0 : index
    %53 = vector.load %arg9[%c0_34, %c0_35] : memref<1x1xf32, #tpu.memory_space<vmem>>, vector<1x1xf32>
    tpu.vector_store %arg9[%c0_34, %c0_35], %52 {strides = array<i32>} : memref<1x1xf32, #tpu.memory_space<vmem>>, vector<1x1xf32>,
    return
  }
  func.func @transform_0(%arg0: i32) -> (i32, i32, i32) {
    %c0_i32 = arith.constant 0 : i32
    %c0_i32_0 = arith.constant 0 : i32
    %c0_i32_1 = arith.constant 0 : i32
    return %arg0, %c0_i32, %c0_i32_0 : i32, i32, i32
  }
  func.func @transform_1(%arg0: i32) -> (i32, i32, i32) {
    %c0_i32 = arith.constant 0 : i32
    %c0_i32_0 = arith.constant 0 : i32
    %c0_i32_1 = arith.constant 0 : i32
    return %arg0, %c0_i32, %c0_i32_0 : i32, i32, i32
  }
  func.func @transform_2(%arg0: i32) -> (i32, i32, i32) {
    %c0_i32 = arith.constant 0 : i32
    %c0_i32_0 = arith.constant 0 : i32
    %c0_i32_1 = arith.constant 0 : i32
    return %arg0, %c0_i32, %c0_i32_0 : i32, i32, i32
  }
  func.func @transform_3(%arg0: i32) -> (i32, i32, i32) {
    %c0_i32 = arith.constant 0 : i32
    %c0_i32_0 = arith.constant 0 : i32
    %c0_i32_1 = arith.constant 0 : i32
    return %arg0, %c0_i32, %c0_i32_0 : i32, i32, i32
  }
  func.func @transform_4(%arg0: i32) -> (i32, i32, i32) {
    %c0_i32 = arith.constant 0 : i32
    %c0_i32_0 = arith.constant 0 : i32
    %c0_i32_1 = arith.constant 0 : i32
    return %arg0, %c0_i32, %c0_i32_0 : i32, i32, i32
  }
  func.func @transform_5(%arg0: i32) -> (i32, i32, i32) {
    %c0_i32 = arith.constant 0 : i32
    %c0_i32_0 = arith.constant 0 : i32
    %c0_i32_1 = arith.constant 0 : i32
    return %arg0, %c0_i32, %c0_i32_0 : i32, i32, i32
  }
  func.func @transform_6(%arg0: i32) -> (i32, i32) {
    %c0_i32 = arith.constant 0 : i32
    %c0_i32_0 = arith.constant 0 : i32
    %c0_i32_1 = arith.constant 0 : i32
    return %c0_i32, %c0_i32_0 : i32, i32
  }
  func.func @transform_7(%arg0: i32) -> (i32, i32) {
    %c0_i32 = arith.constant 0 : i32
    %c0_i32_0 = arith.constant 0 : i32
    %c0_i32_1 = arith.constant 0 : i32
    return %c0_i32, %c0_i32_0 : i32, i32
  }
  func.func @transform_8(%arg0: i32) -> (i32, i32) {
    %c0_i32 = arith.constant 0 : i32
    %c0_i32_0 = arith.constant 0 : i32
    %c0_i32_1 = arith.constant 0 : i32
    return %c0_i32, %c0_i32_0 : i32, i32
  }
}

</mosaic_0001>

<llo_original>
// kernel: _waveglow_loss_jit.1
$region0: #{_waveglow_loss_jit.1}
  #allocation0 [shape = 'u32[]', space=smem, size = 0x4, offset = 0x4, fixed_abs, tag = 'smem constant byte address 0x4 - core index']
  #allocation1 [shape = 'u32[144,128]{1,0:T(1,128)}', space=vmem, size = 0x12000, scoped, tag = 'internal scratch']
  %s0 = inlined_call_operand.vmem [shape: f32[2,8,64], index: 0, kind: input, shape index: {}]
  %s1 = inlined_call_operand.vmem [shape: f32[2,4,64], index: 1, kind: input, shape index: {}]
  %s2 = inlined_call_operand.vmem [shape: f32[2,4,64], index: 2, kind: input, shape index: {}]
  %s3 = inlined_call_operand.vmem [shape: f32[2,16,8], index: 3, kind: input, shape index: {}]
  %s4 = inlined_call_operand.vmem [shape: f32[2,16,8], index: 4, kind: input, shape index: {}]
  %s5 = inlined_call_operand.vmem [shape: f32[2,16,8], index: 5, kind: input, shape index: {}]
  %s6 = inlined_call_operand.hbm [shape: f32[1,1], index: 6, kind: output, shape index: {0}]
  %s7 = inlined_call_operand.hbm [shape: f32[1,1], index: 7, kind: output, shape index: {1}]
  %s8 = inlined_call_operand.hbm [shape: f32[1,1], index: 8, kind: output, shape index: {2}]
  %9 = xla_tuple %s6, %s7, %s8
  %s10 = sld [smem:[#allocation0]]
  $region54: #{_waveglow_loss_jit.1} parent=0
    _
  %s12 = ssub.s32 1, %s10
  %s13 = scalar_select 0, %s12, %s10
  $region1: #{_waveglow_loss_jit.1} parent=0
    #allocation2 [shape = 'u8[512]{0}', space=vmem, size = 0x400, scoped, tag = 'output window, operand 0, single buffered']
    #allocation3 [shape = 's32[1]{0}', space=sflag, size = 0x4, scoped, tag = 'scoped memory for _waveglow_loss_jit.1']
    #allocation4 [shape = 'u8[512]{0}', space=vmem, size = 0x400, scoped, tag = 'output window, operand 1, single buffered']
    #allocation5 [shape = 's32[1]{0}', space=sflag, size = 0x4, scoped, tag = 'scoped memory for _waveglow_loss_jit.1']
    #allocation6 [shape = 'u8[512]{0}', space=vmem, size = 0x400, scoped, tag = 'output window, operand 2, single buffered']
    %14 = vsyncpa [#allocation3], 0
    %15 = vsyncpa [#allocation5], 0
    // Predicated region
    $region2: #{_waveglow_loss_jit.1} parent=1 // pred_check
      _
    $region3: #{_waveglow_loss_jit.1} parent=1 // pred_check_branch
      %17 = sbr.rel (0) target = $region5
    $region4: #{_waveglow_loss_jit.1} parent=1 // pred_region
      _
    $region5: #{_waveglow_loss_jit.1} parent=1 // pred_fallthru
      _
    // Predicated region
    $region6: #{_waveglow_loss_jit.1} parent=1 // pred_check
      _
    $region7: #{_waveglow_loss_jit.1} parent=1 // pred_check_branch
      %19 = sbr.rel (0) target = $region9
    $region8: #{_waveglow_loss_jit.1} parent=1 // pred_region
      _
    $region9: #{_waveglow_loss_jit.1} parent=1 // pred_fallthru
      _
    // Predicated region
    $region10: #{_waveglow_loss_jit.1} parent=1 // pred_check
      _
    $region11: #{_waveglow_loss_jit.1} parent=1 // pred_check_branch
      %21 = sbr.rel (0) target = $region13
    $region12: #{_waveglow_loss_jit.1} parent=1 // pred_region
      _
    $region13: #{_waveglow_loss_jit.1} parent=1 // pred_fallthru
      _
    // Predicated region
    $region14: #{_waveglow_loss_jit.1} parent=1 // pred_check
      _
    $region15: #{_waveglow_loss_jit.1} parent=1 // pred_check_branch
      %23 = sbr.rel (0) target = $region17
    $region16: #{_waveglow_loss_jit.1} parent=1 // pred_region
      _
    $region17: #{_waveglow_loss_jit.1} parent=1 // pred_fallthru
      _
    // Predicated region
    $region18: #{_waveglow_loss_jit.1} parent=1 // pred_check
      _
    $region19: #{_waveglow_loss_jit.1} parent=1 // pred_check_branch
      %25 = sbr.rel (0) target = $region21
    $region20: #{_waveglow_loss_jit.1} parent=1 // pred_region
      _
    $region21: #{_waveglow_loss_jit.1} parent=1 // pred_fallthru
      _
    // Predicated region
    $region22: #{_waveglow_loss_jit.1} parent=1 // pred_check
      _
    $region23: #{_waveglow_loss_jit.1} parent=1 // pred_check_branch
      %27 = sbr.rel (0) target = $region25
    $region24: #{_waveglow_loss_jit.1} parent=1 // pred_region
      _
    $region25: #{_waveglow_loss_jit.1} parent=1 // pred_fallthru
      _
    %p28 = scmp.eq.s32.totalorder 0, 0
    // Predicated region
    $region26: #{_waveglow_loss_jit.1} parent=1 // pred_check
      %p29 = pneg %p28
    $region27: #{_waveglow_loss_jit.1} parent=1 // pred_check_branch
      %31 = sbr.rel (%p29) target = $region29
    $region28: #{_waveglow_loss_jit.1} parent=1 // pred_region
      %vm32 = vcmask 0
      %33 = vst.msk [vmem:[#allocation2] sm:$0x1] %vm32, 0.0
      %34 = vst.msk [vmem:[#allocation4] sm:$0x1] %vm32, 0.0
      %35 = vst.msk [vmem:[#allocation6] sm:$0x1] %vm32, 0.0
    $region29: #{_waveglow_loss_jit.1} parent=1 // pred_fallthru
      _
    %v36 = vld [vmem:[%s0] sm:$0xff]
    %v37 = vld [vmem:[%s0 + $0x8] sm:$0xff]
    %v38 = vld [vmem:[#allocation2] sm:$0x1]
    %v39 = vmul.f32 %v36, %v36
    %v40 = vmul.f32 %v37, %v37
    %vm41 = vcmask 523264
    %v42 = vsel %vm41, %v39, 0.0
    %v43 = vsel %vm41, %v40, 0.0
    %v44 = vadd.f32 %v42, %v43
    %45 = vadd.xlane.f32.xlu0 %v44
    %v46 = vpop.xlane.xlu0 %45
    %v47 = vrot.slane %v46, 4
    %v48 = vadd.f32 %v46, %v47
    %v49 = vrot.slane %v48, 2
    %v50 = vadd.f32 %v48, %v49
    %v51 = vrot.slane %v50, 1
    %v52 = vadd.f32 %v50, %v51
    %s53 = vtos %v52
    %v54 = vstv %s53
    %v55 = vadd.f32 %v38, %v54
    %vm56 = vcmask 0
    %57 = vst.msk [vmem:[#allocation2] sm:$0x1] %vm56, %v55
    %v58 = vld [vmem:[%s1] sm:$0xf]
    %v59 = vld [vmem:[%s1 + $0x4] sm:$0xf]
    %vm60 = vcmask 519168
    %v61 = vsel %vm60, %v58, 0.0
    %v62 = vsel %vm60, %v59, 0.0
    %v63 = vadd.f32 %v61, %v62
    %64 = vadd.xlane.f32.xlu0 %v63
    %v65 = vpop.xlane.xlu0 %64
    %v66 = vrot.slane %v65, 4
    %v67 = vadd.f32 %v65, %v66
    %v68 = vrot.slane %v67, 2
    %v69 = vadd.f32 %v67, %v68
    %v70 = vrot.slane %v69, 1
    %v71 = vadd.f32 %v69, %v70
    %s72 = vtos %v71
    %v73 = vstv %s72
    %v74 = vadd.f32 %v73, 0.0
    %v75 = vld [vmem:[%s2] sm:$0xf]
    %v76 = vld [vmem:[%s2 + $0x4] sm:$0xf]
    %v77 = vsel %vm60, %v75, 0.0
    %v78 = vsel %vm60, %v76, 0.0
    %v79 = vadd.f32 %v77, %v78
    %80 = vadd.xlane.f32.xlu0 %v79
    %v81 = vpop.xlane.xlu0 %80
    %v82 = vrot.slane %v81, 4
    %v83 = vadd.f32 %v81, %v82
    %v84 = vrot.slane %v83, 2
    %v85 = vadd.f32 %v83, %v84
    %v86 = vrot.slane %v85, 1
    %v87 = vadd.f32 %v85, %v86
    %s88 = vtos %v87
    %v89 = vstv %s88
    %v90 = vadd.f32 %v74, %v89
    %v91 = vld [vmem:[#allocation4] sm:$0x1]
    %v92 = vadd.f32 %v91, %v90
    %93 = vst.msk [vmem:[#allocation4] sm:$0x1] %vm56, %v92
    %v94 = vld [vmem:[%s5] sm:$0xff]
    %v95 = vld [vmem:[%s5 + $0x8] sm:$0xff]
    %v96 = vld [vmem:[%s5 + $0x10] sm:$0xff]
    %v97 = vld [vmem:[%s5 + $0x18] sm:$0xff]
    %v98 = vld [vmem:[%s3] sm:$0xff]
    %v99 = vld [vmem:[%s3 + $0x8] sm:$0xff]
    %v100 = vld [vmem:[%s3 + $0x10] sm:$0xff]
    %v101 = vld [vmem:[%s3 + $0x18] sm:$0xff]
    %v102 = vsub.f32 %v98, %v94
    %v103 = vsub.f32 %v99, %v95
    %v104 = vsub.f32 %v100, %v96
    %v105 = vsub.f32 %v101, %v97
    %v106 = vmul.f32 %v102, %v102
    %v107 = vmul.f32 %v103, %v103
    %v108 = vmul.f32 %v104, %v104
    %v109 = vmul.f32 %v105, %v105
    %vm110 = vcmask 64512
    %v111 = vsel %vm110, %v106, 0.0
    %v112 = vsel %vm110, %v107, 0.0
    %v113 = vadd.f32 %v111, %v112
    %v114 = vsel %vm110, %v108, 0.0
    %v115 = vadd.f32 %v113, %v114
    %v116 = vsel %vm110, %v109, 0.0
    %v117 = vadd.f32 %v115, %v116
    %118 = vadd.xlane.f32.xlu0 %v117
    %v119 = vpop.xlane.xlu0 %118
    %v120 = vrot.slane %v119, 4
    %v121 = vadd.f32 %v119, %v120
    %v122 = vrot.slane %v121, 2
    %v123 = vadd.f32 %v121, %v122
    %v124 = vrot.slane %v123, 1
    %v125 = vadd.f32 %v123, %v124
    %s126 = vtos %v125
    %v127 = vstv %s126
    %v128 = vadd.f32 %v127, 0.0
    %v129 = vld [vmem:[%s4] sm:$0xff]
    %v130 = vld [vmem:[%s4 + $0x8] sm:$0xff]
    %v131 = vld [vmem:[%s4 + $0x10] sm:$0xff]
    %v132 = vld [vmem:[%s4 + $0x18] sm:$0xff]
    %v133 = vsub.f32 %v129, %v94
    %v134 = vsub.f32 %v130, %v95
    %v135 = vsub.f32 %v131, %v96
    %v136 = vsub.f32 %v132, %v97
    %v137 = vmul.f32 %v133, %v133
    %v138 = vmul.f32 %v134, %v134
    %v139 = vmul.f32 %v135, %v135
    %v140 = vmul.f32 %v136, %v136
    %v141 = vsel %vm110, %v137, 0.0
    %v142 = vsel %vm110, %v138, 0.0
    %v143 = vadd.f32 %v141, %v142
    %v144 = vsel %vm110, %v139, 0.0
    %v145 = vadd.f32 %v143, %v144
    %v146 = vsel %vm110, %v140, 0.0
    %v147 = vadd.f32 %v145, %v146
    %148 = vadd.xlane.f32.xlu0 %v147
    %v149 = vpop.xlane.xlu0 %148
    %v150 = vrot.slane %v149, 4
    %v151 = vadd.f32 %v149, %v150
    %v152 = vrot.slane %v151, 2
    %v153 = vadd.f32 %v151, %v152
    %v154 = vrot.slane %v153, 1
    %v155 = vadd.f32 %v153, %v154
    %s156 = vtos %v155
    %v157 = vstv %s156
    %v158 = vadd.f32 %v128, %v157
    %v159 = vld [vmem:[#allocation6] sm:$0x1]
    %v160 = vadd.f32 %v159, %v158
    %161 = vst.msk [vmem:[#allocation6] sm:$0x1] %vm56, %v160
    // Predicated region
    $region30: #{_waveglow_loss_jit.1} parent=1 // pred_check
      _
    $region31: #{_waveglow_loss_jit.1} parent=1 // pred_check_branch
      %163 = sbr.rel (0) target = $region33
    $region32: #{_waveglow_loss_jit.1} parent=1 // pred_region
      %s165 = ssub.s32 16, 16
      %166 = vsyncadd [#allocation3], %s165
      %s168 = sshll.u32 [#allocation2], 4
      %s169 = int_to_ptr.vmem [resolvable:$true] %s168
      %171 = dma.vmem_to_hbm [thread:$0]  %s169, 16, %s6, [#allocation3]
    $region33: #{_waveglow_loss_jit.1} parent=1 // pred_fallthru
      _
    // Predicated region
    $region34: #{_waveglow_loss_jit.1} parent=1 // pred_check
      _
    $region35: #{_waveglow_loss_jit.1} parent=1 // pred_check_branch
      %173 = sbr.rel (0) target = $region37
    $region36: #{_waveglow_loss_jit.1} parent=1 // pred_region
      %s175 = ssub.s32 16, 16
      %176 = vsyncadd [#allocation5], %s175
      %s178 = sshll.u32 [#allocation4], 4
      %s179 = int_to_ptr.vmem [resolvable:$true] %s178
      %181 = dma.vmem_to_hbm [thread:$0]  %s179, 16, %s7, [#allocation5]
    $region37: #{_waveglow_loss_jit.1} parent=1 // pred_fallthru
      _
    // Predicated region
    $region38: #{_waveglow_loss_jit.1} parent=1 // pred_check
      _
    $region39: #{_waveglow_loss_jit.1} parent=1 // pred_check_branch
      %183 = sbr.rel (0) target = $region41
    $region40: #{_waveglow_loss_jit.1} parent=1 // pred_region
      %s185 = ssub.s32 16, 16
      %186 = vsyncadd [#allocation5], %s185
      %s188 = sshll.u32 [#allocation6], 4
      %s189 = int_to_ptr.vmem [resolvable:$true] %s188
      %191 = dma.vmem_to_hbm [thread:$0]  %s189, 16, %s8, [#allocation5]
    $region41: #{_waveglow_loss_jit.1} parent=1 // pred_fallthru
      _
    // Predicated region
    $region42: #{_waveglow_loss_jit.1} parent=1 // pred_check
      _
    $region43: #{_waveglow_loss_jit.1} parent=1 // pred_check_branch
      %193 = sbr.rel (0) target = $region45
    $region44: #{_waveglow_loss_jit.1} parent=1 // pred_region
      %194 = dma.done [#allocation3], 16
    $region45: #{_waveglow_loss_jit.1} parent=1 // pred_fallthru
      _
    // Predicated region
    $region46: #{_waveglow_loss_jit.1} parent=1 // pred_check
      _
    $region47: #{_waveglow_loss_jit.1} parent=1 // pred_check_branch
      %196 = sbr.rel (0) target = $region49
    $region48: #{_waveglow_loss_jit.1} parent=1 // pred_region
      %197 = dma.done [#allocation5], 16
    $region49: #{_waveglow_loss_jit.1} parent=1 // pred_fallthru
      _
    // Predicated region
    $region50: #{_waveglow_loss_jit.1} parent=1 // pred_check
      _
    $region51: #{_waveglow_loss_jit.1} parent=1 // pred_check_branch
      %199 = sbr.rel (0) target = $region53
    $region52: #{_waveglow_loss_jit.1} parent=1 // pred_region
      %200 = dma.done [#allocation5], 16
    $region53: #{_waveglow_loss_jit.1} parent=1 // pred_fallthru
      _
    %201 = vsyncpa [#allocation3], 1
    %202 = vsyncpa [#allocation5], 1

</llo_original>
